<compile_context>
chip_gen: v7x
topology: tpu7x:2x2x1
jax: 0.10.0
libtpu: 0.0.40
codegen_flags: <defaults>
</compile_context>

<pallas_src>
import functools

import jax
import jax.numpy as jnp
from jax.experimental import pallas as pl
from jax.experimental.pallas import tpu as pltpu


_LANES = 128
_SUBLANES = 8
# (2048, 128) int32 block = 1 MiB; 2x double-buffered in + aliased out ~= 4 MiB VMEM.
_DEFAULT_TILE_ROWS = 2048


# ----------------------------- Pallas kernel ---------------------------------

def _remap_kernel(vals_ref, out_ref, *, max_input_id, max_output_id, range_start):
    """Elementwise id remap: reduce into the input domain, hash into the output range."""
    v = vals_ref[...]                                   # int32 [tile_rows, 128]

    # --- reduce into [0, max_input_id) ------------------------------------
    if max_input_id & (max_input_id - 1) == 0:
        # Power of two: one VPU AND (== non-negative modulo in two's complement).
        v = v & jnp.int32(max_input_id - 1)
    else:
        v = v % jnp.int32(max_input_id)                 # fallback: emulated int rem

    # --- hash into [0, max_output_id) -------------------------------------
    m = max_output_id
    if m & (m - 1) == 0:
        r = v & jnp.int32(m - 1)
    elif max_input_id <= (1 << 24):
        # Exact f32-reciprocal modulo: v < 2**24 so v and q*m are exact in f32;
        # the truncated quotient can be off by at most 1, fixed by one correction
        # in each direction (cheap VPU selects vs. a long int-rem emulation).
        q = (v.astype(jnp.float32) * jnp.float32(1.0 / m)).astype(jnp.int32)
        r = v - q * jnp.int32(m)
        r = jnp.where(r < 0, r + jnp.int32(m), r)
        r = jnp.where(r >= jnp.int32(m), r - jnp.int32(m), r)
    else:
        # Ids may exceed 2**24: f32 trick not exact -> integer rem fallback.
        r = v % jnp.int32(m)

    if range_start != 0:
        r = r + jnp.int32(range_start)
    out_ref[...] = r


def _remap_values_pallas(values_2d, *, max_input_id, max_output_id, range_start,
                         tile_rows):
    rows, lanes = values_2d.shape
    # rows and tile_rows are both multiples of 8, so the block stays (8,128)-aligned.
    tr = min(tile_rows, rows)
    grid = pl.cdiv(rows, tr)          # partial last block is handled (masked) by Pallas
    kern = functools.partial(
        _remap_kernel,
        max_input_id=max_input_id,
        max_output_id=max_output_id,
        range_start=range_start,
    )
    return pl.pallas_call(
        kern,
        out_shape=jax.ShapeDtypeStruct((rows, lanes), jnp.int32),
        grid_spec=pltpu.PrefetchScalarGridSpec(
            num_scalar_prefetch=0,
            grid=(grid,),
            in_specs=[pl.BlockSpec((tr, lanes), lambda i: (i, 0))],
            out_specs=pl.BlockSpec((tr, lanes), lambda i: (i, 0)),
        ),
        # Same shape/dtype in and out: reuse the (padded) input buffer for the output.
        input_output_aliases={0: 0},
        compiler_params=pltpu.CompilerParams(
            dimension_semantics=("parallel",)),
    )(values_2d)


@functools.partial(
    jax.jit,
    static_argnames=("max_input_id", "max_output_id", "range_start", "tile_rows"))
def _remap_flat(values, *, max_input_id, max_output_id, range_start,
                tile_rows=_DEFAULT_TILE_ROWS):
    """Pad + reshape + kernel + slice fused under a single jit (no extra HBM passes)."""
    n = values.shape[0]
    v = values.astype(jnp.int32)
    pad_unit = _SUBLANES * _LANES
    n_pad = (-n) % pad_unit
    if n_pad:
        v = jnp.pad(v, (0, n_pad))
    v2d = v.reshape(-1, _LANES)
    out2d = _remap_values_pallas(
        v2d,
        max_input_id=max_input_id,
        max_output_id=max_output_id,
        range_start=range_start,
        tile_rows=tile_rows,
    )
    out = out2d.reshape(-1)
    if n_pad:
        out = out[:n]
    return out


# ----------------------------- Module wrapper ---------------------------------

class ManagedCollisionModulePallas:
    """JAX/Pallas analogue of torchrec ManagedCollisionModule.

    forward(values, lengths) -> (remapped_values, lengths)
    where `values` is the flat JaggedTensor value tensor (int32 ids) and
    `lengths` is the per-key/per-sample lengths tensor (passed through).
    """

    def __init__(self, max_output_id: int,
                 remapping_range_start_index: int = 0,
                 max_input_id: int = 2 ** 20,
                 tile_rows: int = _DEFAULT_TILE_ROWS):
        self._max_input_id = max_input_id
        self._remapping_range_start_index = remapping_range_start_index
        self._max_output_id = max_output_id
        self._tile_rows = tile_rows

    def local_map_global_offset(self) -> int:
        return self._remapping_range_start_index

    def preprocess(self, values):
        return values  # identity preprocess in the synthetic concrete module

    def remap(self, values):
        return _remap_flat(
            values,
            max_input_id=self._max_input_id,
            max_output_id=self._max_output_id,
            range_start=self._remapping_range_start_index,
            tile_rows=self._tile_rows,
        )

    def __call__(self, values, lengths, mc_kwargs=None):
        values = self.preprocess(values)
        remapped = self.remap(values)
        return remapped, lengths

    def evict(self):
        return None  # no eviction this iteration


# ----------------------------------- main -------------------------------------

if __name__ == "__main__":
    key = jax.random.PRNGKey(0)
    k_vals, k_lens = jax.random.split(key)

    max_input_id = 2 ** 20
    max_output_id = 1000
    range_start = 0

    # Synthetic JaggedTensor: batch of 8 samples, total 300 ids.
    n_values = 300
    values = jax.random.randint(k_vals, (n_values,), 0, max_input_id, dtype=jnp.int32)
    lengths = jnp.array([40, 30, 50, 20, 60, 35, 45, 20], dtype=jnp.int32)

    mcm = ManagedCollisionModulePallas(
        max_output_id=max_output_id,
        remapping_range_start_index=range_start,
        max_input_id=max_input_id,
    )

    remapped, out_lengths = mcm(values, lengths)
    remapped = jax.block_until_ready(remapped)

    # Reference check (plain JAX)
    ref = (values % max_input_id) % max_output_id + range_start
    assert remapped.shape == values.shape
    assert remapped.dtype == jnp.int32
    assert bool(jnp.all(remapped == ref))
    assert bool(jnp.all((remapped >= range_start) &
                        (remapped < range_start + max_output_id)))
    assert bool(jnp.all(out_lengths == lengths))

    print("KERNEL_OK")
</pallas_src>

<mosaic_0001>
module attributes {stable_mosaic.version = 11 : i64} {
  func.func @_remap_kernel(%arg0: i32, %arg1: memref<8x128xi32, #tpu.memory_space<vmem>>, %arg2: memref<8x128xi32, #tpu.memory_space<vmem>>) attributes {dimension_semantics = [#tpu.dimension_semantics<parallel>], iteration_bounds = array<i64: 1>, scalar_prefetch = 0 : i64, scratch_operands = 0 : i64, tpu.core_type = #tpu.core_type<tc>, window_params = [{transform_indices = @transform_0, window_bounds = array<i64: 8, 128>}, {transform_indices = @transform_1, window_bounds = array<i64: 8, 128>}]} {
    %c0 = arith.constant 0 : index
    %c0_0 = arith.constant 0 : index
    %0 = vector.load %arg1[%c0, %c0_0] : memref<8x128xi32, #tpu.memory_space<vmem>>, vector<8x128xi32>
    %c1048575_i32 = arith.constant 1048575 : i32
    %1 = vector.broadcast %c1048575_i32 : i32 to vector<8x128xi32>
    %2 = arith.andi %0, %1 : vector<8x128xi32>
    %3 = arith.sitofp %2 : vector<8x128xi32> to vector<8x128xf32>
    %cst = arith.constant 1.000000e-03 : f32
    %4 = vector.broadcast %cst : f32 to vector<8x128xf32>
    %5 = arith.mulf %3, %4 : vector<8x128xf32>
    %6 = arith.fptosi %5 : vector<8x128xf32> to vector<8x128xi32>
    %c1000_i32 = arith.constant 1000 : i32
    %7 = vector.broadcast %c1000_i32 : i32 to vector<8x128xi32>
    %8 = arith.muli %6, %7 : vector<8x128xi32>
    %9 = arith.subi %2, %8 : vector<8x128xi32>
    %c0_i32 = arith.constant 0 : i32
    %10 = vector.broadcast %c0_i32 : i32 to vector<8x128xi32>
    %11 = arith.cmpi slt, %9, %10 : vector<8x128xi32>
    %c1000_i32_1 = arith.constant 1000 : i32
    %12 = vector.broadcast %c1000_i32_1 : i32 to vector<8x128xi32>
    %13 = arith.addi %9, %12 : vector<8x128xi32>
    %14 = arith.select %11, %13, %9 : vector<8x128xi1>, vector<8x128xi32>
    %c1000_i32_2 = arith.constant 1000 : i32
    %15 = vector.broadcast %c1000_i32_2 : i32 to vector<8x128xi32>
    %16 = arith.cmpi sge, %14, %15 : vector<8x128xi32>
    %c1000_i32_3 = arith.constant 1000 : i32
    %17 = vector.broadcast %c1000_i32_3 : i32 to vector<8x128xi32>
    %18 = arith.subi %14, %17 : vector<8x128xi32>
    %19 = arith.select %16, %18, %14 : vector<8x128xi1>, vector<8x128xi32>
    %c0_4 = arith.constant 0 : index
    %c0_5 = arith.constant 0 : index
    %20 = vector.load %arg2[%c0_4, %c0_5] : memref<8x128xi32, #tpu.memory_space<vmem>>, vector<8x128xi32>
    tpu.vector_store %arg2[%c0_4, %c0_5], %19 {strides = array<i32>} : memref<8x128xi32, #tpu.memory_space<vmem>>, vector<8x128xi32>,
    return
  }
  func.func @transform_0(%arg0: i32) -> (i32, i32) {
    %c0_i32 = arith.constant 0 : i32
    %c0_i32_0 = arith.constant 0 : i32
    return %arg0, %c0_i32 : i32, i32
  }
  func.func @transform_1(%arg0: i32) -> (i32, i32) {
    %c0_i32 = arith.constant 0 : i32
    %c0_i32_0 = arith.constant 0 : i32
    return %arg0, %c0_i32 : i32, i32
  }
}

</mosaic_0001>

<llo_original>
// kernel: _remap_flat.1
$region0: #{_remap_flat.1}
  #allocation0 [shape = 'u32[]', space=smem, size = 0x4, offset = 0x4, fixed_abs, tag = 'smem constant byte address 0x4 - core index']
  #allocation1 [shape = 'u32[144,128]{1,0:T(1,128)}', space=vmem, size = 0x12000, scoped, tag = 'internal scratch']
  %s0 = inlined_call_operand.vmem [shape: s32[8,128], index: 0, kind: input, shape index: {}, may-alias: {0,1}]
  %s1 = inlined_call_operand.vmem [shape: s32[8,128], index: 1, kind: output, shape index: {}, may-alias: {0,1}]
  %s2 = sld [smem:[#allocation0]]
  $region14: #{_remap_flat.1} parent=0
    _
  %s4 = ssub.s32 1, %s2
  %s5 = scalar_select 0, %s4, %s2
  // Predicated region
  $region2: #{_remap_flat.1} parent=0 // pred_check
    _
  $region3: #{_remap_flat.1} parent=0 // pred_check_branch
    %7 = sbr.rel (0) target = $region5
  $region4: #{_remap_flat.1} parent=0 // pred_region
    _
  $region5: #{_remap_flat.1} parent=0 // pred_fallthru
    _
  %v8 = vld [vmem:[%s0] sm:$0xff]
  %v9 = vand.u32 %v8, 1048575
  %v10 = vcvt.s32.f32 %v9
  %v11 = vmul.f32 %v10, 0.001
  %v12 = vcvt.f32.s32.to.zero.pseudo %v11
  %v13 = vmul.u32 %v12, 1000
  %v14 = vsub.s32 %v9, %v13
  %vm15 = vcmp.lt.s32.totalorder %v14, 0
  %v16 = vadd.s32 %v14, 1000
  %v17 = vsel %vm15, %v16, %v14
  %vm18 = vcmp.ge.s32.totalorder %v17, 1000
  %v19 = vsub.s32 %v17, 1000
  %v20 = vsel %vm18, %v19, %v17
  %21 = vst [vmem:[%s1] sm:$0xff] %v20
  // Predicated region
  $region6: #{_remap_flat.1} parent=0 // pred_check
    _
  $region7: #{_remap_flat.1} parent=0 // pred_check_branch
    %23 = sbr.rel (0) target = $region9
  $region8: #{_remap_flat.1} parent=0 // pred_region
    _
  $region9: #{_remap_flat.1} parent=0 // pred_fallthru
    _
  // Predicated region
  $region10: #{_remap_flat.1} parent=0 // pred_check
    _
  $region11: #{_remap_flat.1} parent=0 // pred_check_branch
    %25 = sbr.rel (0) target = $region13
  $region12: #{_remap_flat.1} parent=0 // pred_region
    _
  $region13: #{_remap_flat.1} parent=0 // pred_fallthru
    _

</llo_original>
